<compile_context>
chip_gen: v5e
topology: v5e:2x2
jax: 0.10.0
libtpu: 0.0.40
codegen_flags: <defaults>
</compile_context>

<pallas_src>
import functools

import jax
import jax.numpy as jnp
from jax.experimental import pallas as pl
from jax.experimental.pallas import tpu as pltpu


def _round_up(x, m):
    return (x + m - 1) // m * m


# ----------------------------- Pallas kernels ------------------------------ #

def _conv_stats_kernel(x_ref, w_ref, mask_ref, y_ref, sum_ref, sq_ref, stacked_ref,
                       *, Wp, kh, kw, C):
    """3x3 conv for one image as ONE MXU matmul + fused BN partial stats.

    x_ref:      (1, C, Lf)        bf16  flat zero-padded image (+1 left guard, right-padded)
    w_ref:      (OC, kh*kw*C)     bf16  taps folded into the contraction axis
    mask_ref:   (1, Spad)         f32   1.0 on valid output pixels, 0.0 on garbage/tail cols
    y_ref:      (1, OC, Spad)     bf16  conv output on the flat (valid rows x padded cols) grid
    sum_ref:    (1, OC, 1)        f32   per-image per-channel sum   over valid pixels
    sq_ref:     (1, OC, 1)        f32   per-image per-channel sum^2 over valid pixels
    stacked_ref:(kh*kw*C, Spad)   bf16  VMEM scratch: stacked 9-tap slab
    """
    Spad = y_ref.shape[-1]
    xv = x_ref[0]                                      # (C, Lf) bf16, resident in VMEM

    # Build the stacked slab once per image: each tap is a statically shifted,
    # lane-contiguous slice of the flat padded image (cross-lane shift done once per tap).
    for dy in range(kh):
        for dx in range(kw):
            t = dy * kw + dx
            off = dy * Wp + dx                         # static offset
            stacked_ref[t * C:(t + 1) * C, :] = xv[:, off:off + Spad]

    # Single matmul: (OC, 9C) @ (9C, Spad) -> (OC, Spad), f32 accumulate on the MXU.
    acc = jnp.dot(w_ref[...], stacked_ref[...], preferred_element_type=jnp.float32)

    y_ref[0] = acc.astype(y_ref.dtype)                 # lane-dense bf16 store

    # Fused BN partial statistics over valid pixels only (stats from the f32 accumulator).
    m = mask_ref[...]                                  # (1, Spad)
    am = acc * m
    sum_ref[0] = jnp.sum(am, axis=1, keepdims=True)        # (OC, 1)
    sq_ref[0] = jnp.sum(am * acc, axis=1, keepdims=True)   # (OC, 1)


def _bn_lrelu_kernel(y_ref, scale_ref, shift_ref, o_ref, *, neg_slope):
    """Per-channel affine (folded BN) + LeakyReLU on the flat lane-dense layout.

    y_ref: (1, OC, Spad) bf16 ; scale/shift: (OC, 1) f32 ; o_ref: (1, OC, Spad) f32.
    Garbage/tail columns are processed too (harmless) and dropped outside the kernel.
    """
    z = y_ref[0].astype(jnp.float32) * scale_ref[...] + shift_ref[...]
    o_ref[0] = jnp.where(z >= 0.0, z, neg_slope * z)


# ------------------------------ forward wrapper ----------------------------- #

def basic_conv_forward(x, conv_w, bn_gamma, bn_beta, *, eps=1e-5, neg_slope=0.01):
    """BasicConv forward: Conv2d(bias=False, k=3, s=1, p=1) + BatchNorm2d(training batch
    stats) + LeakyReLU(0.01).  x is NCHW; returns NCHW f32."""
    N, C, H, W = x.shape
    OC, Cw, kh, kw = conv_w.shape
    assert Cw == C and kh == 3 and kw == 3, "only the 3x3 / stride-1 / pad-1 path is implemented"

    Hp, Wp = H + kh - 1, W + kw - 1
    S = H * Wp                                    # flat output grid: valid rows x padded cols
    Spad = _round_up(S, 128)                      # lane-dense last dim (multiple of 128)
    max_off = (kh - 1) * Wp + (kw - 1)            # largest static tap shift
    Lf = _round_up(max(1 + Hp * Wp + 1, max_off + Spad), 128)   # flat slab length (guarded)
    KC = kh * kw * C

    # ---- layout prep (bf16 BEFORE padding; no im2col, no transposes of the image) ----
    xb = x.astype(jnp.bfloat16)
    xp = jnp.pad(xb, ((0, 0), (0, 0), (1, 1), (1, 1)))                      # (N,C,Hp,Wp)
    xflat = jnp.pad(xp.reshape(N, C, Hp * Wp),
                    ((0, 0), (0, 0), (1, Lf - 1 - Hp * Wp)))                # (N,C,Lf) bf16

    # Taps folded into the contraction axis: w2[oc, (dy*kw+dx)*C + ci] = conv_w[oc, ci, dy, dx]
    w2 = jnp.transpose(conv_w.astype(jnp.float32), (0, 2, 3, 1)).reshape(OC, KC)
    w2 = w2.astype(jnp.bfloat16)

    # Valid-pixel mask over the flat padded grid (kills 2 garbage cols/row + tail padding).
    col = jnp.arange(Wp)
    col_valid = ((col >= 1) & (col <= W)).astype(jnp.float32)
    mask = jnp.pad(jnp.tile(col_valid, (H,)), (0, Spad - S)).reshape(1, Spad)

    cparams = pltpu.CompilerParams(
        dimension_semantics=("parallel",),
        vmem_limit_bytes=48 * 1024 * 1024,   # headroom under v7x's 64 MiB physical VMEM
    )

    # ---- pass 1: direct conv (single MXU matmul / image) + fused BN partial stats ----
    yext, psum, psq = pl.pallas_call(
        functools.partial(_conv_stats_kernel, Wp=Wp, kh=kh, kw=kw, C=C),
        out_shape=(jax.ShapeDtypeStruct((N, OC, Spad), jnp.bfloat16),
                   jax.ShapeDtypeStruct((N, OC, 1), jnp.float32),
                   jax.ShapeDtypeStruct((N, OC, 1), jnp.float32)),
        grid=(N,),
        in_specs=[
            pl.BlockSpec((1, C, Lf), lambda n: (n, 0, 0)),       # one padded image / step
            pl.BlockSpec((OC, KC), lambda n: (0, 0)),            # folded weights, resident
            pl.BlockSpec((1, Spad), lambda n: (0, 0)),           # valid-pixel mask, resident
        ],
        out_specs=(
            pl.BlockSpec((1, OC, Spad), lambda n: (n, 0, 0)),
            pl.BlockSpec((1, OC, 1), lambda n: (n, 0, 0)),
            pl.BlockSpec((1, OC, 1), lambda n: (n, 0, 0)),
        ),
        scratch_shapes=[pltpu.VMEM((KC, Spad), jnp.bfloat16)],
        compiler_params=cparams,
    )(xflat, w2, mask)

    # ---- tiny JAX reduce: BN scale/shift from fused partial sums (true valid count) ----
    count = float(N * H * W)
    s1 = jnp.sum(psum[:, :, 0], axis=0)                   # (OC,)
    s2 = jnp.sum(psq[:, :, 0], axis=0)                    # (OC,)
    mean = s1 / count
    var = jnp.maximum(s2 / count - mean * mean, 0.0)      # biased variance (PyTorch training BN)
    scale = bn_gamma.astype(jnp.float32) / jnp.sqrt(var + eps)
    shift = bn_beta.astype(jnp.float32) - mean * scale

    # ---- pass 2: lane-dense BN affine + LeakyReLU on the flat layout ----
    out_flat = pl.pallas_call(
        functools.partial(_bn_lrelu_kernel, neg_slope=neg_slope),
        out_shape=jax.ShapeDtypeStruct((N, OC, Spad), jnp.float32),
        grid=(N,),
        in_specs=[
            pl.BlockSpec((1, OC, Spad), lambda n: (n, 0, 0)),
            pl.BlockSpec((OC, 1), lambda n: (0, 0)),
            pl.BlockSpec((OC, 1), lambda n: (0, 0)),
        ],
        out_specs=pl.BlockSpec((1, OC, Spad), lambda n: (n, 0, 0)),
        compiler_params=cparams,
    )(yext, scale.reshape(OC, 1), shift.reshape(OC, 1))

    # Drop tail padding + the 2 garbage columns per row with one XLA slice; result is NCHW.
    out = out_flat[:, :, :S].reshape(N, OC, H, Wp)[:, :, :, 1:1 + W]
    return out


# ------------------------------- demo --------------------------------------- #

if __name__ == "__main__":
    key = jax.random.PRNGKey(0)
    k_x, k_w = jax.random.split(key)

    # BasicConv(in_channels=4, out_channels=8, kernel_size=3, stride=1, padding=1)
    N, C_in, C_out, H, W = 2, 4, 8, 16, 16
    kh = kw = 3

    x = jax.random.normal(k_x, (N, C_in, H, W), dtype=jnp.float32)
    fan_in = C_in * kh * kw
    bound = (1.0 / fan_in) ** 0.5
    conv_w = jax.random.uniform(k_w, (C_out, C_in, kh, kw),
                                minval=-bound, maxval=bound, dtype=jnp.float32)
    bn_gamma = jnp.ones((C_out,), jnp.float32)   # PyTorch BatchNorm2d default weight
    bn_beta = jnp.zeros((C_out,), jnp.float32)   # PyTorch BatchNorm2d default bias

    fwd = jax.jit(basic_conv_forward)
    out = fwd(x, conv_w, bn_gamma, bn_beta)
    out = jax.block_until_ready(out)
    assert out.shape == (N, C_out, H, W)

    # Pure-JAX reference mirroring the kernel's numerics: bf16 conv inputs, f32 accumulation,
    # BN stats from the f32 conv, bf16-quantized activation fed to the BN affine (matching the
    # bf16 intermediate store), f32 epilogue.
    xq = x.astype(jnp.bfloat16).astype(jnp.float32)
    wq = conv_w.astype(jnp.bfloat16).astype(jnp.float32)
    ref = jax.lax.conv_general_dilated(
        xq, wq, window_strides=(1, 1), padding=((1, 1), (1, 1)),
        dimension_numbers=("NCHW", "OIHW", "NCHW"),
        precision=jax.lax.Precision.HIGHEST)
    rmean = ref.mean(axis=(0, 2, 3))
    rvar = ((ref - rmean.reshape(1, -1, 1, 1)) ** 2).mean(axis=(0, 2, 3))
    rscale = bn_gamma / jnp.sqrt(rvar + 1e-5)
    rshift = bn_beta - rmean * rscale
    ref_q = ref.astype(jnp.bfloat16).astype(jnp.float32)
    rbn = ref_q * rscale.reshape(1, -1, 1, 1) + rshift.reshape(1, -1, 1, 1)
    ref_out = jnp.where(rbn >= 0, rbn, 0.01 * rbn)
    assert jnp.allclose(out, ref_out, atol=1e-2, rtol=1e-2)

    print("KERNEL_OK")
</pallas_src>

<mosaic_0001>
module attributes {stable_mosaic.version = 11 : i64} {
  func.func @_conv_stats_kernel(%arg0: i32, %arg1: memref<1x4x512xbf16, #tpu.memory_space<vmem>>, %arg2: memref<8x36xbf16, #tpu.memory_space<vmem>>, %arg3: memref<1x384xf32, #tpu.memory_space<vmem>>, %arg4: memref<1x8x384xbf16, #tpu.memory_space<vmem>>, %arg5: memref<1x8x1xf32, #tpu.memory_space<vmem>>, %arg6: memref<1x8x1xf32, #tpu.memory_space<vmem>>, %arg7: memref<36x384xbf16, #tpu.memory_space<vmem>>) attributes {dimension_semantics = [#tpu.dimension_semantics<parallel>], iteration_bounds = array<i64: 2>, scalar_prefetch = 0 : i64, scratch_operands = 1 : i64, tpu.core_type = #tpu.core_type<tc>, window_params = [{transform_indices = @transform_0, window_bounds = array<i64: 1, 4, 512>}, {pipeline_mode = #tpu.pipeline_mode<synchronous>, transform_indices = @transform_1, window_bounds = array<i64: 8, 36>}, {pipeline_mode = #tpu.pipeline_mode<synchronous>, transform_indices = @transform_2, window_bounds = array<i64: 1, 384>}, {transform_indices = @transform_3, window_bounds = array<i64: 1, 8, 384>}, {transform_indices = @transform_4, window_bounds = array<i64: 1, 8, 1>}, {transform_indices = @transform_5, window_bounds = array<i64: 1, 8, 1>}]} {
    %c0 = arith.constant 0 : index
    %c0_0 = arith.constant 0 : index
    %c0_1 = arith.constant 0 : index
    %0 = vector.load %arg1[%c0, %c0_0, %c0_1] : memref<1x4x512xbf16, #tpu.memory_space<vmem>>, vector<1x4x512xbf16>
    %1 = vector.shape_cast %0 : vector<1x4x512xbf16> to vector<4x512xbf16>
    %2 = vector.extract_strided_slice %1 {offsets = [0, 0], sizes = [4, 384], strides = [1, 1]} : vector<4x512xbf16> to vector<4x384xbf16>
    %c0_2 = arith.constant 0 : index
    %c0_3 = arith.constant 0 : index
    %3 = vector.load %arg7[%c0_2, %c0_3] : memref<36x384xbf16, #tpu.memory_space<vmem>>, vector<4x384xbf16>
    tpu.vector_store %arg7[%c0_2, %c0_3], %2 {strides = array<i32>} : memref<36x384xbf16, #tpu.memory_space<vmem>>, vector<4x384xbf16>,
    %4 = vector.extract_strided_slice %1 {offsets = [0, 1], sizes = [4, 384], strides = [1, 1]} : vector<4x512xbf16> to vector<4x384xbf16>
    %c4 = arith.constant 4 : index
    %c0_4 = arith.constant 0 : index
    %5 = vector.load %arg7[%c4, %c0_4] : memref<36x384xbf16, #tpu.memory_space<vmem>>, vector<4x384xbf16>
    tpu.vector_store %arg7[%c4, %c0_4], %4 {strides = array<i32>} : memref<36x384xbf16, #tpu.memory_space<vmem>>, vector<4x384xbf16>,
    %6 = vector.extract_strided_slice %1 {offsets = [0, 2], sizes = [4, 384], strides = [1, 1]} : vector<4x512xbf16> to vector<4x384xbf16>
    %c8 = arith.constant 8 : index
    %c0_5 = arith.constant 0 : index
    %7 = vector.load %arg7[%c8, %c0_5] : memref<36x384xbf16, #tpu.memory_space<vmem>>, vector<4x384xbf16>
    tpu.vector_store %arg7[%c8, %c0_5], %6 {strides = array<i32>} : memref<36x384xbf16, #tpu.memory_space<vmem>>, vector<4x384xbf16>,
    %8 = vector.extract_strided_slice %1 {offsets = [0, 18], sizes = [4, 384], strides = [1, 1]} : vector<4x512xbf16> to vector<4x384xbf16>
    %c12 = arith.constant 12 : index
    %c0_6 = arith.constant 0 : index
    %9 = vector.load %arg7[%c12, %c0_6] : memref<36x384xbf16, #tpu.memory_space<vmem>>, vector<4x384xbf16>
    tpu.vector_store %arg7[%c12, %c0_6], %8 {strides = array<i32>} : memref<36x384xbf16, #tpu.memory_space<vmem>>, vector<4x384xbf16>,
    %10 = vector.extract_strided_slice %1 {offsets = [0, 19], sizes = [4, 384], strides = [1, 1]} : vector<4x512xbf16> to vector<4x384xbf16>
    %c16 = arith.constant 16 : index
    %c0_7 = arith.constant 0 : index
    %11 = vector.load %arg7[%c16, %c0_7] : memref<36x384xbf16, #tpu.memory_space<vmem>>, vector<4x384xbf16>
    tpu.vector_store %arg7[%c16, %c0_7], %10 {strides = array<i32>} : memref<36x384xbf16, #tpu.memory_space<vmem>>, vector<4x384xbf16>,
    %12 = vector.extract_strided_slice %1 {offsets = [0, 20], sizes = [4, 384], strides = [1, 1]} : vector<4x512xbf16> to vector<4x384xbf16>
    %c20 = arith.constant 20 : index
    %c0_8 = arith.constant 0 : index
    %13 = vector.load %arg7[%c20, %c0_8] : memref<36x384xbf16, #tpu.memory_space<vmem>>, vector<4x384xbf16>
    tpu.vector_store %arg7[%c20, %c0_8], %12 {strides = array<i32>} : memref<36x384xbf16, #tpu.memory_space<vmem>>, vector<4x384xbf16>,
    %14 = vector.extract_strided_slice %1 {offsets = [0, 36], sizes = [4, 384], strides = [1, 1]} : vector<4x512xbf16> to vector<4x384xbf16>
    %c24 = arith.constant 24 : index
    %c0_9 = arith.constant 0 : index
    %15 = vector.load %arg7[%c24, %c0_9] : memref<36x384xbf16, #tpu.memory_space<vmem>>, vector<4x384xbf16>
    tpu.vector_store %arg7[%c24, %c0_9], %14 {strides = array<i32>} : memref<36x384xbf16, #tpu.memory_space<vmem>>, vector<4x384xbf16>,
    %16 = vector.extract_strided_slice %1 {offsets = [0, 37], sizes = [4, 384], strides = [1, 1]} : vector<4x512xbf16> to vector<4x384xbf16>
    %c28 = arith.constant 28 : index
    %c0_10 = arith.constant 0 : index
    %17 = vector.load %arg7[%c28, %c0_10] : memref<36x384xbf16, #tpu.memory_space<vmem>>, vector<4x384xbf16>
    tpu.vector_store %arg7[%c28, %c0_10], %16 {strides = array<i32>} : memref<36x384xbf16, #tpu.memory_space<vmem>>, vector<4x384xbf16>,
    %18 = vector.extract_strided_slice %1 {offsets = [0, 38], sizes = [4, 384], strides = [1, 1]} : vector<4x512xbf16> to vector<4x384xbf16>
    %c32 = arith.constant 32 : index
    %c0_11 = arith.constant 0 : index
    %19 = vector.load %arg7[%c32, %c0_11] : memref<36x384xbf16, #tpu.memory_space<vmem>>, vector<4x384xbf16>
    tpu.vector_store %arg7[%c32, %c0_11], %18 {strides = array<i32>} : memref<36x384xbf16, #tpu.memory_space<vmem>>, vector<4x384xbf16>,
    %c0_12 = arith.constant 0 : index
    %c0_13 = arith.constant 0 : index
    %20 = vector.load %arg2[%c0_12, %c0_13] : memref<8x36xbf16, #tpu.memory_space<vmem>>, vector<8x36xbf16>
    %c0_14 = arith.constant 0 : index
    %c0_15 = arith.constant 0 : index
    %21 = vector.load %arg7[%c0_14, %c0_15] : memref<36x384xbf16, #tpu.memory_space<vmem>>, vector<36x384xbf16>
    %cst = arith.constant dense<0.000000e+00> : vector<8x384xf32>
    %22 = tpu.matmul %20, %21, %cst {dimension_numbers = #tpu.dot_dimension_numbers<[1], [0], [0], [1], [0, 0, 1, 1], [], []>} : vector<8x36xbf16>, vector<36x384xbf16>, vector<8x384xf32> -> vector<8x384xf32>
    %23 = arith.truncf %22 : vector<8x384xf32> to vector<8x384xbf16>
    %c0_16 = arith.constant 0 : index
    %c0_17 = arith.constant 0 : index
    %c0_18 = arith.constant 0 : index
    %24 = vector.load %arg4[%c0_16, %c0_17, %c0_18] : memref<1x8x384xbf16, #tpu.memory_space<vmem>>, vector<1x8x384xbf16>
    %25 = vector.shape_cast %24 : vector<1x8x384xbf16> to vector<8x384xbf16>
    %26 = vector.shape_cast %23 : vector<8x384xbf16> to vector<1x8x384xbf16>
    tpu.vector_store %arg4[%c0_16, %c0_17, %c0_18], %26 {strides = array<i32>} : memref<1x8x384xbf16, #tpu.memory_space<vmem>>, vector<1x8x384xbf16>,
    %c0_19 = arith.constant 0 : index
    %c0_20 = arith.constant 0 : index
    %27 = vector.load %arg3[%c0_19, %c0_20] : memref<1x384xf32, #tpu.memory_space<vmem>>, vector<1x384xf32>
    %28 = vector.broadcast %27 : vector<1x384xf32> to vector<8x384xf32>
    %29 = arith.mulf %22, %28 : vector<8x384xf32>
    %cst_21 = arith.constant dense<0.000000e+00> : vector<8xf32>
    %30 = vector.multi_reduction <add>, %29, %cst_21 [1] : vector<8x384xf32> to vector<8xf32>
    %31 = vector.shape_cast %30 : vector<8xf32> to vector<8x1xf32>
    %c0_22 = arith.constant 0 : index
    %c0_23 = arith.constant 0 : index
    %c0_24 = arith.constant 0 : index
    %32 = vector.load %arg5[%c0_22, %c0_23, %c0_24] : memref<1x8x1xf32, #tpu.memory_space<vmem>>, vector<1x8x1xf32>
    %33 = vector.shape_cast %32 : vector<1x8x1xf32> to vector<8x1xf32>
    %34 = vector.shape_cast %31 : vector<8x1xf32> to vector<1x8x1xf32>
    tpu.vector_store %arg5[%c0_22, %c0_23, %c0_24], %34 {strides = array<i32>} : memref<1x8x1xf32, #tpu.memory_space<vmem>>, vector<1x8x1xf32>,
    %35 = arith.mulf %29, %22 : vector<8x384xf32>
    %cst_25 = arith.constant dense<0.000000e+00> : vector<8xf32>
    %36 = vector.multi_reduction <add>, %35, %cst_25 [1] : vector<8x384xf32> to vector<8xf32>
    %37 = vector.shape_cast %36 : vector<8xf32> to vector<8x1xf32>
    %c0_26 = arith.constant 0 : index
    %c0_27 = arith.constant 0 : index
    %c0_28 = arith.constant 0 : index
    %38 = vector.load %arg6[%c0_26, %c0_27, %c0_28] : memref<1x8x1xf32, #tpu.memory_space<vmem>>, vector<1x8x1xf32>
    %39 = vector.shape_cast %38 : vector<1x8x1xf32> to vector<8x1xf32>
    %40 = vector.shape_cast %37 : vector<8x1xf32> to vector<1x8x1xf32>
    tpu.vector_store %arg6[%c0_26, %c0_27, %c0_28], %40 {strides = array<i32>} : memref<1x8x1xf32, #tpu.memory_space<vmem>>, vector<1x8x1xf32>,
    return
  }
  func.func @transform_0(%arg0: i32) -> (i32, i32, i32) {
    %c0_i32 = arith.constant 0 : i32
    %c0_i32_0 = arith.constant 0 : i32
    %c0_i32_1 = arith.constant 0 : i32
    return %arg0, %c0_i32, %c0_i32_0 : i32, i32, i32
  }
  func.func @transform_1(%arg0: i32) -> (i32, i32) {
    %c0_i32 = arith.constant 0 : i32
    %c0_i32_0 = arith.constant 0 : i32
    %c0_i32_1 = arith.constant 0 : i32
    return %c0_i32, %c0_i32_0 : i32, i32
  }
  func.func @transform_2(%arg0: i32) -> (i32, i32) {
    %c0_i32 = arith.constant 0 : i32
    %c0_i32_0 = arith.constant 0 : i32
    %c0_i32_1 = arith.constant 0 : i32
    return %c0_i32, %c0_i32_0 : i32, i32
  }
  func.func @transform_3(%arg0: i32) -> (i32, i32, i32) {
    %c0_i32 = arith.constant 0 : i32
    %c0_i32_0 = arith.constant 0 : i32
    %c0_i32_1 = arith.constant 0 : i32
    return %arg0, %c0_i32, %c0_i32_0 : i32, i32, i32
  }
  func.func @transform_4(%arg0: i32) -> (i32, i32, i32) {
    %c0_i32 = arith.constant 0 : i32
    %c0_i32_0 = arith.constant 0 : i32
    %c0_i32_1 = arith.constant 0 : i32
    return %arg0, %c0_i32, %c0_i32_0 : i32, i32, i32
  }
  func.func @transform_5(%arg0: i32) -> (i32, i32, i32) {
    %c0_i32 = arith.constant 0 : i32
    %c0_i32_0 = arith.constant 0 : i32
    %c0_i32_1 = arith.constant 0 : i32
    return %arg0, %c0_i32, %c0_i32_0 : i32, i32, i32
  }
}

module attributes {stable_mosaic.version = 11 : i64} {
  func.func @_bn_lrelu_kernel(%arg0: i32, %arg1: memref<1x8x384xbf16, #tpu.memory_space<vmem>>, %arg2: memref<8x1xf32, #tpu.memory_space<vmem>>, %arg3: memref<8x1xf32, #tpu.memory_space<vmem>>, %arg4: memref<1x8x384xf32, #tpu.memory_space<vmem>>) attributes {dimension_semantics = [#tpu.dimension_semantics<parallel>], iteration_bounds = array<i64: 2>, scalar_prefetch = 0 : i64, scratch_operands = 0 : i64, tpu.core_type = #tpu.core_type<tc>, window_params = [{transform_indices = @transform_0, window_bounds = array<i64: 1, 8, 384>}, {pipeline_mode = #tpu.pipeline_mode<synchronous>, transform_indices = @transform_1, window_bounds = array<i64: 8, 1>}, {pipeline_mode = #tpu.pipeline_mode<synchronous>, transform_indices = @transform_2, window_bounds = array<i64: 8, 1>}, {transform_indices = @transform_3, window_bounds = array<i64: 1, 8, 384>}]} {
    %c0 = arith.constant 0 : index
    %c0_0 = arith.constant 0 : index
    %c0_1 = arith.constant 0 : index
    %0 = vector.load %arg1[%c0, %c0_0, %c0_1] : memref<1x8x384xbf16, #tpu.memory_space<vmem>>, vector<1x8x384xbf16>
    %1 = vector.shape_cast %0 : vector<1x8x384xbf16> to vector<8x384xbf16>
    %2 = arith.extf %1 : vector<8x384xbf16> to vector<8x384xf32>
    %c0_2 = arith.constant 0 : index
    %c0_3 = arith.constant 0 : index
    %3 = vector.load %arg2[%c0_2, %c0_3] : memref<8x1xf32, #tpu.memory_space<vmem>>, vector<8x1xf32>
    %4 = vector.broadcast %3 : vector<8x1xf32> to vector<8x384xf32>
    %5 = arith.mulf %2, %4 : vector<8x384xf32>
    %c0_4 = arith.constant 0 : index
    %c0_5 = arith.constant 0 : index
    %6 = vector.load %arg3[%c0_4, %c0_5] : memref<8x1xf32, #tpu.memory_space<vmem>>, vector<8x1xf32>
    %7 = vector.broadcast %6 : vector<8x1xf32> to vector<8x384xf32>
    %8 = arith.addf %5, %7 : vector<8x384xf32>
    %cst = arith.constant 0.000000e+00 : f32
    %9 = vector.broadcast %cst : f32 to vector<8x384xf32>
    %10 = arith.cmpf oge, %8, %9 : vector<8x384xf32>
    %cst_6 = arith.constant 0.00999999977 : f32
    %11 = vector.broadcast %cst_6 : f32 to vector<8x384xf32>
    %12 = arith.mulf %11, %8 : vector<8x384xf32>
    %13 = arith.select %10, %8, %12 : vector<8x384xi1>, vector<8x384xf32>
    %c0_7 = arith.constant 0 : index
    %c0_8 = arith.constant 0 : index
    %c0_9 = arith.constant 0 : index
    %14 = vector.load %arg4[%c0_7, %c0_8, %c0_9] : memref<1x8x384xf32, #tpu.memory_space<vmem>>, vector<1x8x384xf32>
    %15 = vector.shape_cast %14 : vector<1x8x384xf32> to vector<8x384xf32>
    %16 = vector.shape_cast %13 : vector<8x384xf32> to vector<1x8x384xf32>
    tpu.vector_store %arg4[%c0_7, %c0_8, %c0_9], %16 {strides = array<i32>} : memref<1x8x384xf32, #tpu.memory_space<vmem>>, vector<1x8x384xf32>,
    return
  }
  func.func @transform_0(%arg0: i32) -> (i32, i32, i32) {
    %c0_i32 = arith.constant 0 : i32
    %c0_i32_0 = arith.constant 0 : i32
    %c0_i32_1 = arith.constant 0 : i32
    return %arg0, %c0_i32, %c0_i32_0 : i32, i32, i32
  }
  func.func @transform_1(%arg0: i32) -> (i32, i32) {
    %c0_i32 = arith.constant 0 : i32
    %c0_i32_0 = arith.constant 0 : i32
    %c0_i32_1 = arith.constant 0 : i32
    return %c0_i32, %c0_i32_0 : i32, i32
  }
  func.func @transform_2(%arg0: i32) -> (i32, i32) {
    %c0_i32 = arith.constant 0 : i32
    %c0_i32_0 = arith.constant 0 : i32
    %c0_i32_1 = arith.constant 0 : i32
    return %c0_i32, %c0_i32_0 : i32, i32
  }
  func.func @transform_3(%arg0: i32) -> (i32, i32, i32) {
    %c0_i32 = arith.constant 0 : i32
    %c0_i32_0 = arith.constant 0 : i32
    %c0_i32_1 = arith.constant 0 : i32
    return %arg0, %c0_i32, %c0_i32_0 : i32, i32, i32
  }
}

</mosaic_0001>

<llo_original>
// kernel: tile.8
$region0: #{tile.8}
  #allocation0 [shape = 's32[1]{0}', space=sflag, size = 0x4, scoped, tag = 'scoped memory for tile.8']
  %s0 = inlined_call_operand.vmem [shape: f32[18], index: 0, kind: input, shape index: {}]
  %s1 = inlined_call_operand.vmem [shape: f32[16,18], index: 1, kind: output, shape index: {}]
  // Predicated region
  $region2: #{tile.8} parent=0 // pred_check
    _
  $region3: #{tile.8} parent=0 // pred_check_branch
    %3 = sbr.rel (0) target = $region5
  $region4: #{tile.8} parent=0 // pred_region
    _
  $region5: #{tile.8} parent=0 // pred_fallthru
    _
  %v4 = vld [vmem:[%s0] ss:$0 sm:$0xff]
  %5 = vst [vmem:[%s1] sm:$0xff] %v4
  %s6 = scalar_lea.vmem %s1, 8
  %7 = vst [vmem:[%s6] sm:$0xff] %v4

// kernel: tile.9
$region0: #{tile.9}
  %s0 = inlined_call_operand.vmem [shape: f32[16,18], index: 0, kind: input, shape index: {}]
  %s1 = inlined_call_operand.vmem [shape: f32[288], index: 1, kind: output, shape index: {}]
  $region1: #{tile.9} parent=0
    #allocation0 [shape = 'u8[4096]{0}', space=vmem, size = 0x1000, scoped, tag = 'scoped mem for output reshape']
    %v2 = vld [vmem:[%s0] sm:$0x1]
    %vm3 = vcmask 146432
    %4 = vst.msk [vmem:[#allocation0] sm:$0x1] %vm3, %v2
    %s5 = scalar_lea.vmem %s0, 7
    %v6 = vld [vmem:[%s5] sm:$0x1]
    %s7 = scalar_lea.vmem %s0, 7
    %v8 = vld [vmem:[%s7] sm:$0x1]
    %vm9 = vcmask 15360
    %v10 = vsel %vm9, %v8, %v6
    %11 = vrot.lane.b32.xlu0 %v10, 126
    %v12 = vpop.permute.xlu0 %11
    %vm13 = vcmask 130048
    %s14 = scalar_lea.vmem [#allocation0], 1
    %15 = vst.msk [vmem:[%s14] sm:$0x1] %vm13, %v12
    %vm16 = vcmask 1048560
    %17 = vst.msk [vmem:[#allocation0] sm:$0x1] %vm16, %v12
    %s18 = scalar_lea.vmem %s0, 14
    %v19 = vld [vmem:[%s18] sm:$0x1]
    %s20 = scalar_lea.vmem %s0, 14
    %v21 = vld [vmem:[%s20] sm:$0x1]
    %vm22 = vcmask 31744
    %v23 = vsel %vm22, %v21, %v19
    %24 = vrot.lane.b32.xlu0 %v23, 124
    %v25 = vpop.permute.xlu0 %24
    %vm26 = vcmask 113664
    %s27 = scalar_lea.vmem [#allocation0], 2
    %28 = vst.msk [vmem:[%s27] sm:$0x1] %vm26, %v25
    %vm29 = vcmask 1048544
    %s30 = scalar_lea.vmem [#allocation0], 1
    %31 = vst.msk [vmem:[%s30] sm:$0x1] %vm29, %v25
    %s32 = scalar_lea.vmem %s0, 6
    %v33 = vld [vmem:[%s32] sm:$0x1]
    %34 = vrot.lane.b32.xlu0 %v33, 108
    %v35 = vpop.permute.xlu0 %34
    %vm36 = vcmask 1032032
    %37 = vst.msk [vmem:[#allocation0] sm:$0x1] %vm36, %v35
    %s38 = scalar_lea.vmem %s0, 13
    %v39 = vld [vmem:[%s38] sm:$0x1]
    %40 = vrot.lane.b32.xlu0 %v39, 106
    %v41 = vpop.permute.xlu0 %40
    %vm42 = vcmask 1015632
    %s43 = scalar_lea.vmem [#allocation0], 1
    %44 = vst.msk [vmem:[%s43] sm:$0x1] %vm42, %v41
    %s45 = scalar_lea.vmem %s0, 5
    %v46 = vld [vmem:[%s45] sm:$0x1]
    %47 = vrot.lane.b32.xlu0 %v46, 90
    %v48 = vpop.permute.xlu0 %47
    %vm49 = vcmask 884432
    %50 = vst.msk [vmem:[#allocation0] sm:$0x1] %vm49, %v48
    %s51 = scalar_lea.vmem %s0, 12
    %v52 = vld [vmem:[%s51] sm:$0x1]
    %53 = vrot.lane.b32.xlu0 %v52, 88
    %v54 = vpop.permute.xlu0 %53
    %vm55 = vcmask 868032
    %s56 = scalar_lea.vmem [#allocation0], 1
    %57 = vst.msk [vmem:[%s56] sm:$0x1] %vm55, %v54
    %s58 = scalar_lea.vmem %s0, 4
    %v59 = vld [vmem:[%s58] sm:$0x1]
    %60 = vrot.lane.b32.xlu0 %v59, 72
    %v61 = vpop.permute.xlu0 %60
    %vm62 = vcmask 736832
    %63 = vst.msk [vmem:[#allocation0] sm:$0x1] %vm62, %v61
    %s64 = scalar_lea.vmem %s0, 11
    %v65 = vld [vmem:[%s64] sm:$0x1]
    %66 = vrot.lane.b32.xlu0 %v65, 70
    %v67 = vpop.permute.xlu0 %66
    %vm68 = vcmask 720432
    %s69 = scalar_lea.vmem [#allocation0], 1
    %70 = vst.msk [vmem:[%s69] sm:$0x1] %vm68, %v67
    %s71 = scalar_lea.vmem %s0, 3
    %v72 = vld [vmem:[%s71] sm:$0x1]
    %73 = vrot.lane.b32.xlu0 %v72, 54
    %v74 = vpop.permute.xlu0 %73
    %vm75 = vcmask 589232
    %76 = vst.msk [vmem:[#allocation0] sm:$0x1] %vm75, %v74
    %s77 = scalar_lea.vmem %s0, 10
    %v78 = vld [vmem:[%s77] sm:$0x1]
    %79 = vrot.lane.b32.xlu0 %v78, 52
    %v80 = vpop.permute.xlu0 %79
    %vm81 = vcmask 572832
    %s82 = scalar_lea.vmem [#allocation0], 1
    %83 = vst.msk [vmem:[%s82] sm:$0x1] %vm81, %v80
    %s84 = scalar_lea.vmem %s0, 2
    %v85 = vld [vmem:[%s84] sm:$0x1]
    %86 = vrot.lane.b32.xlu0 %v85, 36
    %v87 = vpop.permute.xlu0 %86
    %vm88 = vcmask 441632
    %89 = vst.msk [vmem:[#allocation0] sm:$0x1] %vm88, %v87
    %s90 = scalar_lea.vmem %s0, 9
    %v91 = vld [vmem:[%s90] sm:$0x1]
    %92 = vrot.lane.b32.xlu0 %v91, 34
    %v93 = vpop.permute.xlu0 %92
    %vm94 = vcmask 425232
    %s95 = scalar_lea.vmem [#allocation0], 1
    %96 = vst.msk [vmem:[%s95] sm:$0x1] %vm94, %v93
    %s97 = scalar_lea.vmem %s0, 1
    %v98 = vld [vmem:[%s97] sm:$0x1]
    %99 = vrot.lane.b32.xlu0 %v98, 18
    %v100 = vpop.permute.xlu0 %99
    %vm101 = vcmask 294032
    %102 = vst.msk [vmem:[#allocation0] sm:$0x1] %vm101, %v100
    %s103 = scalar_lea.vmem %s0, 8
    %v104 = vld [vmem:[%s103] sm:$0x1]
    %105 = vrot.lane.b32.xlu0 %v104, 16
    %v106 = vpop.permute.xlu0 %105
    %vm107 = vcmask 277632
    %s108 = scalar_lea.vmem [#allocation0], 1
    %109 = vst.msk [vmem:[%s108] sm:$0x1] %vm107, %v106
    %s110 = scalar_lea.vmem %s0, 15
    %v111 = vld [vmem:[%s110] sm:$0x1]
    %112 = vrot.lane.b32.xlu0 %v111, 14
    %v113 = vpop.permute.xlu0 %112
    %vm114 = vcmask 261232
    %s115 = scalar_lea.vmem [#allocation0], 2
    %116 = vst.msk [vmem:[%s115] sm:$0x1] %vm114, %v113
    %s118 = ssub.s32 16, 1
    %v119 = vld [vmem:[#allocation0] sm:%s118]
    %s121 = ssub.s32 16, 1
    %122 = vst [vmem:[%s1] sm:%s121] %v119

// kernel: basic_conv_forward.3
$region0: #{basic_conv_forward.3}
  #allocation0 [shape = 'u32[]', space=smem, size = 0x4, offset = 0x4, fixed_abs, tag = 'smem constant byte address 0x4 - core index']
  #allocation1 [shape = 'u32[72,128]{1,0:T(1,128)}', space=vmem, size = 0x9000, scoped, tag = 'internal scratch']
  %s0 = inlined_call_operand.vmem [shape: bf16[2,8,384], index: 0, kind: input, shape index: {}]
  %s1 = inlined_call_operand.vmem [shape: f32[8,1], index: 1, kind: input, shape index: {}]
  %s2 = inlined_call_operand.vmem [shape: f32[8,1], index: 2, kind: input, shape index: {}]
  %s3 = inlined_call_operand.vmem [shape: f32[2,8,384], index: 3, kind: output, shape index: {}]
  %s4 = sld [smem:[#allocation0]]
  $region45: #{basic_conv_forward.3} parent=0
    _
  %s6 = ssub.s32 1, %s4
  %s7 = scalar_select 0, %s6, %s4
  loop: start=0, step=1, limit=4
  $region2: #{basic_conv_forward.3} parent=0 // loop_pre_header
    _
  $region3: #{basic_conv_forward.3} parent=0 // loop_header
    %s9 = sphi 0, %s13
    %p10 = scmp.ge.s32.totalorder %s9, 4
    %s19 = sphi 0, %s21
    %s22 = sphi 0, %s19
    %s23 = sphi 0, %s22
    %s39 = sphi 0, %s23
    %s43 = sphi 0, %s43
    %s45 = sphi 0, %s43
    %s46 = sphi 0, %s45
    %s60 = sphi 0, %s46
    %s64 = sphi 0, %s64
    %s66 = sphi 0, %s64
    %s67 = sphi 0, %s66
    %s81 = sphi 0, %s67
    %s87 = sphi 0, %s89
    %s90 = sphi 0, %s87
    %s91 = sphi 0, %s90
    %s107 = sphi 0, %s91
  $region4: #{basic_conv_forward.3} parent=0 // loop_header_branch
    %12 = sbr.rel (%p10) target = $region8
  $region5: #{basic_conv_forward.3} parent=0 // loop_body
    %s14 = ssub.s32 %s9, 1
    %s15 = ssub.s32 %s9, 2
    %s16 = sadd.s32 %s9, 1
    %s17 = ssub.s32 %s9, %s16
    %p18 = scmp.eq.s32.totalorder %s17, 0
    %s20 = sadd.s32 %s19, 1
    %s21 = scalar_select %p18, %s19, %s20
    %p24 = pneg %p18
    %p25 = scmp.eq.s32.totalorder %s9, 1
    %p26 = por %p24, %p25
    %p27 = scmp.ne.s32.totalorder %s19, %s22
    %p28 = scmp.eq.s32.totalorder %s9, 0
    %p29 = por %p27, %p28
    %p30 = scmp.ne.s32.totalorder %s19, %s22
    %p31 = scmp.eq.s32.totalorder %s14, 1
    %p32 = por %p30, %p31
    %p33 = scmp.ne.s32.totalorder %s22, %s23
    %p34 = scmp.eq.s32.totalorder %s14, 0
    %p35 = por %p33, %p34
    %p36 = scmp.ne.s32.totalorder %s22, %s23
    %p37 = scmp.eq.s32.totalorder %s15, 1
    %p38 = por %p36, %p37
    %p40 = scmp.ne.s32.totalorder %s23, %s39
    %p41 = scmp.eq.s32.totalorder %s15, 0
    %p42 = por %p40, %p41
    %s44 = sadd.s32 %s43, 1
    %p47 = scmp.eq.s32.totalorder %s9, 1
    %p48 = scmp.ne.s32.totalorder %s43, %s45
    %p49 = scmp.eq.s32.totalorder %s9, 0
    %p50 = por %p48, %p49
    %p51 = scmp.ne.s32.totalorder %s43, %s45
    %p52 = scmp.eq.s32.totalorder %s14, 1
    %p53 = por %p51, %p52
    %p54 = scmp.ne.s32.totalorder %s45, %s46
    %p55 = scmp.eq.s32.totalorder %s14, 0
    %p56 = por %p54, %p55
    %p57 = scmp.ne.s32.totalorder %s45, %s46
    %p58 = scmp.eq.s32.totalorder %s15, 1
    %p59 = por %p57, %p58
    %p61 = scmp.ne.s32.totalorder %s46, %s60
    %p62 = scmp.eq.s32.totalorder %s15, 0
    %p63 = por %p61, %p62
    %s65 = sadd.s32 %s64, 1
    %p68 = scmp.eq.s32.totalorder %s9, 1
    %p69 = scmp.ne.s32.totalorder %s64, %s66
    %p70 = scmp.eq.s32.totalorder %s9, 0
    %p71 = por %p69, %p70
    %p72 = scmp.ne.s32.totalorder %s64, %s66
    %p73 = scmp.eq.s32.totalorder %s14, 1
    %p74 = por %p72, %p73
    %p75 = scmp.ne.s32.totalorder %s66, %s67
    %p76 = scmp.eq.s32.totalorder %s14, 0
    %p77 = por %p75, %p76
    %p78 = scmp.ne.s32.totalorder %s66, %s67
    %p79 = scmp.eq.s32.totalorder %s15, 1
    %p80 = por %p78, %p79
    %p82 = scmp.ne.s32.totalorder %s67, %s81
    %p83 = scmp.eq.s32.totalorder %s15, 0
    %p84 = por %p82, %p83
    %s85 = ssub.s32 %s9, %s16
    %p86 = scmp.eq.s32.totalorder %s85, 0
    %s88 = sadd.s32 %s87, 1
    %s89 = scalar_select %p86, %s87, %s88
    %p92 = pneg %p86
    %p93 = scmp.eq.s32.totalorder %s9, 1
    %p94 = por %p92, %p93
    %p95 = scmp.ne.s32.totalorder %s87, %s90
    %p96 = scmp.eq.s32.totalorder %s9, 0
    %p97 = por %p95, %p96
    %p98 = scmp.ne.s32.totalorder %s87, %s90
    %p99 = scmp.eq.s32.totalorder %s14, 1
    %p100 = por %p98, %p99
    %p101 = scmp.ne.s32.totalorder %s90, %s91
    %p102 = scmp.eq.s32.totalorder %s14, 0
    %p103 = por %p101, %p102
    %p104 = scmp.ne.s32.totalorder %s90, %s91
    %p105 = scmp.eq.s32.totalorder %s15, 1
    %p106 = por %p104, %p105
    %p108 = scmp.ne.s32.totalorder %s91, %s107
    %p109 = scmp.eq.s32.totalorder %s15, 0
    %p110 = por %p108, %p109
    %p111 = scmp.le.s32.totalorder 1, %s9
    %p112 = scmp.lt.s32.totalorder %s9, 3
    %p113 = pnand %p111, %p112
    %p114 = pneg %p113
    // Predicated region
    $region9: #{basic_conv_forward.3} parent=5 // pred_check
      _
    $region10: #{basic_conv_forward.3} parent=5 // pred_check_branch
      %116 = sbr.rel (%p113) target = $region12
    $region11: #{basic_conv_forward.3} parent=5 // pred_region
      %s117 = ssub.s32 %s9, 1
      // Predicated region
      $region13: #{basic_conv_forward.3} parent=11 // pred_check
        %p118 = pneg %p56
      $region14: #{basic_conv_forward.3} parent=11 // pred_check_branch
        %120 = sbr.rel (%p118) target = $region16
      $region15: #{basic_conv_forward.3} parent=11 // pred_region
        _
      $region16: #{basic_conv_forward.3} parent=11 // pred_fallthru
        _
      // Predicated region
      $region17: #{basic_conv_forward.3} parent=11 // pred_check
        %p121 = pneg %p77
      $region18: #{basic_conv_forward.3} parent=11 // pred_check_branch
        %123 = sbr.rel (%p121) target = $region20
      $region19: #{basic_conv_forward.3} parent=11 // pred_region
        _
      $region20: #{basic_conv_forward.3} parent=11 // pred_fallthru
        _
    $region12: #{basic_conv_forward.3} parent=5 // pred_fallthru
      _
    %p124 = scmp.lt.s32.totalorder %s9, 2
    // Predicated region
    $region21: #{basic_conv_forward.3} parent=5 // pred_check
      %p125 = pneg %p124
    $region22: #{basic_conv_forward.3} parent=5 // pred_check_branch
      %127 = sbr.rel (%p125) target = $region24
    $region23: #{basic_conv_forward.3} parent=5 // pred_region
      // Predicated region
      $region25: #{basic_conv_forward.3} parent=23 // pred_check
        %p128 = pneg %p29
      $region26: #{basic_conv_forward.3} parent=23 // pred_check_branch
        %130 = sbr.rel (%p128) target = $region28
      $region27: #{basic_conv_forward.3} parent=23 // pred_region
        %p131 = scmp.lt.s32.totalorder %s9, 1
        %s132 = scalar_select %p131, %s9, 1
        %s133 = smul.addr %s132, 3
        %s134 = smul.addr %s133, 4
        %s135 = scalar_lea.vmem %s0, %s134
      $region28: #{basic_conv_forward.3} parent=23 // pred_fallthru
        _
    $region24: #{basic_conv_forward.3} parent=5 // pred_fallthru
      _
    %p136 = scmp.le.s32.totalorder 1, %s9
    %p137 = scmp.lt.s32.totalorder %s9, 3
    %p138 = pnand %p136, %p137
    %p139 = pneg %p138
    // Predicated region
    $region29: #{basic_conv_forward.3} parent=5 // pred_check
      _
    $region30: #{basic_conv_forward.3} parent=5 // pred_check_branch
      %141 = sbr.rel (%p138) target = $region32
    $region31: #{basic_conv_forward.3} parent=5 // pred_region
      %s142 = ssub.s32 %s9, 1
      %p143 = scmp.lt.s32.totalorder %s14, 1
      %s144 = scalar_select %p143, %s14, 1
      %s145 = smul.addr %s144, 3
      %s146 = smul.addr %s145, 4
      %s147 = scalar_lea.vmem %s0, %s146
      %p148 = pneg %p35
      %p149 = pneg %p32
      %p150 = pneg %p56
      %p151 = pneg %p53
      %p152 = pneg %p77
      %p153 = pneg %p74
      %p154 = pneg %p103
      %p155 = pneg %p100
      %p156 = scmp.lt.s32.totalorder %s14, 1
      %s157 = scalar_select %p156, %s14, 1
      %s158 = smul.addr %s157, 3
      %s159 = smul.addr %s158, 8
      %s160 = scalar_lea.vmem %s3, %s159
      %p161 = scmp.lt.s32.totalorder %s14, 1
      %s162 = scalar_select %p161, %s14, 1
      %s163 = smul.addr %s162, 3
      %s164 = smul.addr %s163, 4
      %s165 = scalar_lea.vmem %s0, %s164
      %p166 = scmp.lt.s32.totalorder %s14, 1
      %s167 = scalar_select %p166, %s14, 1
      %s168 = smul.addr %s167, 3
      %s169 = smul.addr %s168, 8
      %s170 = scalar_lea.vmem %s3, %s169
      %v171 = vld [vmem:[%s165] sm:$0xff]
      %v172 = vld [vmem:[%s165 + $0x8] sm:$0xf]
      %v173 = vunpack.c.l.bf16 %v171
      %v174 = vunpack.c.h.bf16 %v171
      %v175 = vunpack.c.l.bf16 %v172
      %v176 = vld [vmem:[%s1] sm:$0xff]
      %178 = vset.pattern.permute.xlu0 0
      %179 = vperm.xlu0 %178, %v176
      %v180 = vpop.permute.xlu0 %179
      %v182 = vmul.f32 %v173, %v180
      %v183 = vmul.f32 %v174, %v180
      %v184 = vmul.f32 %v175, %v180
      %v185 = vld [vmem:[%s2] sm:$0xff]
      %187 = vset.pattern.permute.xlu0 0
      %188 = vperm.xlu0 %187, %v185
      %v189 = vpop.permute.xlu0 %188
      %v191 = vadd.f32 %v182, %v189
      %v192 = vadd.f32 %v183, %v189
      %v193 = vadd.f32 %v184, %v189
      %vm194 = vcmp.ge.f32.partialorder %v191, 0.0
      %vm195 = vcmp.ge.f32.partialorder %v192, 0.0
      %vm196 = vcmp.ge.f32.partialorder %v193, 0.0
      %v197 = vmul.f32 %v191, 0.01
      %v198 = vmul.f32 %v192, 0.01
      %v199 = vmul.f32 %v193, 0.01
      %v200 = vsel %vm194, %v191, %v197
      %v201 = vsel %vm195, %v192, %v198
      %v202 = vsel %vm196, %v193, %v199
      %203 = vst [vmem:[%s170] sm:$0xff] %v200
      %204 = vst [vmem:[%s170 + $0x8] sm:$0xff] %v201
      %205 = vst [vmem:[%s170 + $0x10] sm:$0xff] %v202
      %p206 = scmp.lt.s32.totalorder %s14, 1
      %s207 = scalar_select %p206, %s14, 1
      %s208 = smul.addr %s207, 3
      %s209 = smul.addr %s208, 8
      %s210 = scalar_lea.vmem %s3, %s209
      // Predicated region
      $region33: #{basic_conv_forward.3} parent=31 // pred_check
        %p211 = pneg %p100
      $region34: #{basic_conv_forward.3} parent=31 // pred_check_branch
        %213 = sbr.rel (%p211) target = $region36
      $region35: #{basic_conv_forward.3} parent=31 // pred_region
        _
      $region36: #{basic_conv_forward.3} parent=31 // pred_fallthru
        _
    $region32: #{basic_conv_forward.3} parent=5 // pred_fallthru
      _
    %p214 = scmp.le.s32.totalorder 2, %s9
    // Predicated region
    $region37: #{basic_conv_forward.3} parent=5 // pred_check
      %p215 = pneg %p214
    $region38: #{basic_conv_forward.3} parent=5 // pred_check_branch
      %217 = sbr.rel (%p215) target = $region40
    $region39: #{basic_conv_forward.3} parent=5 // pred_region
      %s218 = ssub.s32 %s9, 2
      // Predicated region
      $region41: #{basic_conv_forward.3} parent=39 // pred_check
        %p219 = pneg %p106
      $region42: #{basic_conv_forward.3} parent=39 // pred_check_branch
        %221 = sbr.rel (%p219) target = $region44
      $region43: #{basic_conv_forward.3} parent=39 // pred_region
        %p222 = scmp.lt.s32.totalorder %s15, 1
        %s223 = scalar_select %p222, %s15, 1
        %s224 = smul.addr %s223, 3
        %s225 = smul.addr %s224, 8
        %s226 = scalar_lea.vmem %s3, %s225
      $region44: #{basic_conv_forward.3} parent=39 // pred_fallthru
        _
    $region40: #{basic_conv_forward.3} parent=5 // pred_fallthru
      _
  $region6: #{basic_conv_forward.3} parent=0 // loop_footer
    %s13 = sadd.s32 1, %s9
  $region7: #{basic_conv_forward.3} parent=0 // loop_footer_branch
    %8 = sbr.rel target = $region3
  $region8: #{basic_conv_forward.3} parent=0 // loop_exit
    _

// kernel: basic_conv_forward.2
$region0: #{basic_conv_forward.2}
  #allocation0 [shape = 'u32[]', space=smem, size = 0x4, offset = 0x4, fixed_abs, tag = 'smem constant byte address 0x4 - core index']
  #allocation1 [shape = 'u32[72,128]{1,0:T(1,128)}', space=vmem, size = 0x9000, scoped, tag = 'internal scratch']
  #allocation2 [shape = 'bf16[36,384]{1,0:T(8,128)(2,1)}', space=vmem, size = 0x7800, scoped, tag = 'scratch operand']
  %s0 = inlined_call_operand.vmem [shape: bf16[2,4,512], index: 0, kind: input, shape index: {}]
  %s1 = inlined_call_operand.vmem [shape: bf16[8,36], index: 1, kind: input, shape index: {}]
  %s2 = inlined_call_operand.vmem [shape: f32[1,384], index: 2, kind: input, shape index: {}]
  %s3 = inlined_call_operand.vmem [shape: bf16[2,8,384], index: 3, kind: output, shape index: {0}]
  %s4 = inlined_call_operand.vmem [shape: f32[2,8,1], index: 4, kind: output, shape index: {1}]
  %s5 = inlined_call_operand.vmem [shape: f32[2,8,1], index: 5, kind: output, shape index: {2}]
  %6 = xla_tuple %s3, %s4, %s5
  %s7 = sld [smem:[#allocation0]]
  $region61: #{basic_conv_forward.2} parent=0
    _
  %s9 = ssub.s32 1, %s7
  %s10 = scalar_select 0, %s9, %s7
  loop: start=0, step=1, limit=4
  $region2: #{basic_conv_forward.2} parent=0 // loop_pre_header
    _
  $region3: #{basic_conv_forward.2} parent=0 // loop_header
    %s12 = sphi 0, %s16
    %p13 = scmp.ge.s32.totalorder %s12, 4
    %s22 = sphi 0, %s24
    %s25 = sphi 0, %s22
    %s26 = sphi 0, %s25
    %s42 = sphi 0, %s26
    %s46 = sphi 0, %s46
    %s48 = sphi 0, %s46
    %s49 = sphi 0, %s48
    %s63 = sphi 0, %s49
    %s67 = sphi 0, %s67
    %s69 = sphi 0, %s67
    %s70 = sphi 0, %s69
    %s84 = sphi 0, %s70
    %s90 = sphi 0, %s92
    %s93 = sphi 0, %s90
    %s94 = sphi 0, %s93
    %s110 = sphi 0, %s94
    %s116 = sphi 0, %s118
    %s119 = sphi 0, %s116
    %s120 = sphi 0, %s119
    %s136 = sphi 0, %s120
    %s142 = sphi 0, %s144
    %s145 = sphi 0, %s142
    %s146 = sphi 0, %s145
    %s162 = sphi 0, %s146
  $region4: #{basic_conv_forward.2} parent=0 // loop_header_branch
    %15 = sbr.rel (%p13) target = $region8
  $region5: #{basic_conv_forward.2} parent=0 // loop_body
    %s17 = ssub.s32 %s12, 1
    %s18 = ssub.s32 %s12, 2
    %s19 = sadd.s32 %s12, 1
    %s20 = ssub.s32 %s12, %s19
    %p21 = scmp.eq.s32.totalorder %s20, 0
    %s23 = sadd.s32 %s22, 1
    %s24 = scalar_select %p21, %s22, %s23
    %p27 = pneg %p21
    %p28 = scmp.eq.s32.totalorder %s12, 1
    %p29 = por %p27, %p28
    %p30 = scmp.ne.s32.totalorder %s22, %s25
    %p31 = scmp.eq.s32.totalorder %s12, 0
    %p32 = por %p30, %p31
    %p33 = scmp.ne.s32.totalorder %s22, %s25
    %p34 = scmp.eq.s32.totalorder %s17, 1
    %p35 = por %p33, %p34
    %p36 = scmp.ne.s32.totalorder %s25, %s26
    %p37 = scmp.eq.s32.totalorder %s17, 0
    %p38 = por %p36, %p37
    %p39 = scmp.ne.s32.totalorder %s25, %s26
    %p40 = scmp.eq.s32.totalorder %s18, 1
    %p41 = por %p39, %p40
    %p43 = scmp.ne.s32.totalorder %s26, %s42
    %p44 = scmp.eq.s32.totalorder %s18, 0
    %p45 = por %p43, %p44
    %s47 = sadd.s32 %s46, 1
    %p50 = scmp.eq.s32.totalorder %s12, 1
    %p51 = scmp.ne.s32.totalorder %s46, %s48
    %p52 = scmp.eq.s32.totalorder %s12, 0
    %p53 = por %p51, %p52
    %p54 = scmp.ne.s32.totalorder %s46, %s48
    %p55 = scmp.eq.s32.totalorder %s17, 1
    %p56 = por %p54, %p55
    %p57 = scmp.ne.s32.totalorder %s48, %s49
    %p58 = scmp.eq.s32.totalorder %s17, 0
    %p59 = por %p57, %p58
    %p60 = scmp.ne.s32.totalorder %s48, %s49
    %p61 = scmp.eq.s32.totalorder %s18, 1
    %p62 = por %p60, %p61
    %p64 = scmp.ne.s32.totalorder %s49, %s63
    %p65 = scmp.eq.s32.totalorder %s18, 0
    %p66 = por %p64, %p65
    %s68 = sadd.s32 %s67, 1
    %p71 = scmp.eq.s32.totalorder %s12, 1
    %p72 = scmp.ne.s32.totalorder %s67, %s69
    %p73 = scmp.eq.s32.totalorder %s12, 0
    %p74 = por %p72, %p73
    %p75 = scmp.ne.s32.totalorder %s67, %s69
    %p76 = scmp.eq.s32.totalorder %s17, 1
    %p77 = por %p75, %p76
    %p78 = scmp.ne.s32.totalorder %s69, %s70
    %p79 = scmp.eq.s32.totalorder %s17, 0
    %p80 = por %p78, %p79
    %p81 = scmp.ne.s32.totalorder %s69, %s70
    %p82 = scmp.eq.s32.totalorder %s18, 1
    %p83 = por %p81, %p82
    %p85 = scmp.ne.s32.totalorder %s70, %s84
    %p86 = scmp.eq.s32.totalorder %s18, 0
    %p87 = por %p85, %p86
    %s88 = ssub.s32 %s12, %s19
    %p89 = scmp.eq.s32.totalorder %s88, 0
    %s91 = sadd.s32 %s90, 1
    %s92 = scalar_select %p89, %s90, %s91
    %p95 = pneg %p89
    %p96 = scmp.eq.s32.totalorder %s12, 1
    %p97 = por %p95, %p96
    %p98 = scmp.ne.s32.totalorder %s90, %s93
    %p99 = scmp.eq.s32.totalorder %s12, 0
    %p100 = por %p98, %p99
    %p101 = scmp.ne.s32.totalorder %s90, %s93
    %p102 = scmp.eq.s32.totalorder %s17, 1
    %p103 = por %p101, %p102
    %p104 = scmp.ne.s32.totalorder %s93, %s94
    %p105 = scmp.eq.s32.totalorder %s17, 0
    %p106 = por %p104, %p105
    %p107 = scmp.ne.s32.totalorder %s93, %s94
    %p108 = scmp.eq.s32.totalorder %s18, 1
    %p109 = por %p107, %p108
    %p111 = scmp.ne.s32.totalorder %s94, %s110
    %p112 = scmp.eq.s32.totalorder %s18, 0
    %p113 = por %p111, %p112
    %s114 = ssub.s32 %s12, %s19
    %p115 = scmp.eq.s32.totalorder %s114, 0
    %s117 = sadd.s32 %s116, 1
    %s118 = scalar_select %p115, %s116, %s117
    %p121 = pneg %p115
    %p122 = scmp.eq.s32.totalorder %s12, 1
    %p123 = por %p121, %p122
    %p124 = scmp.ne.s32.totalorder %s116, %s119
    %p125 = scmp.eq.s32.totalorder %s12, 0
    %p126 = por %p124, %p125
    %p127 = scmp.ne.s32.totalorder %s116, %s119
    %p128 = scmp.eq.s32.totalorder %s17, 1
    %p129 = por %p127, %p128
    %p130 = scmp.ne.s32.totalorder %s119, %s120
    %p131 = scmp.eq.s32.totalorder %s17, 0
    %p132 = por %p130, %p131
    %p133 = scmp.ne.s32.totalorder %s119, %s120
    %p134 = scmp.eq.s32.totalorder %s18, 1
    %p135 = por %p133, %p134
    %p137 = scmp.ne.s32.totalorder %s120, %s136
    %p138 = scmp.eq.s32.totalorder %s18, 0
    %p139 = por %p137, %p138
    %s140 = ssub.s32 %s12, %s19
    %p141 = scmp.eq.s32.totalorder %s140, 0
    %s143 = sadd.s32 %s142, 1
    %s144 = scalar_select %p141, %s142, %s143
    %p147 = pneg %p141
    %p148 = scmp.eq.s32.totalorder %s12, 1
    %p149 = por %p147, %p148
    %p150 = scmp.ne.s32.totalorder %s142, %s145
    %p151 = scmp.eq.s32.totalorder %s12, 0
    %p152 = por %p150, %p151
    %p153 = scmp.ne.s32.totalorder %s142, %s145
    %p154 = scmp.eq.s32.totalorder %s17, 1
    %p155 = por %p153, %p154
    %p156 = scmp.ne.s32.totalorder %s145, %s146
    %p157 = scmp.eq.s32.totalorder %s17, 0
    %p158 = por %p156, %p157
    %p159 = scmp.ne.s32.totalorder %s145, %s146
    %p160 = scmp.eq.s32.totalorder %s18, 1
    %p161 = por %p159, %p160
    %p163 = scmp.ne.s32.totalorder %s146, %s162
    %p164 = scmp.eq.s32.totalorder %s18, 0
    %p165 = por %p163, %p164
    %p166 = scmp.le.s32.totalorder 1, %s12
    %p167 = scmp.lt.s32.totalorder %s12, 3
    %p168 = pnand %p166, %p167
    %p169 = pneg %p168
    // Predicated region
    $region9: #{basic_conv_forward.2} parent=5 // pred_check
      _
    $region10: #{basic_conv_forward.2} parent=5 // pred_check_branch
      %171 = sbr.rel (%p168) target = $region12
    $region11: #{basic_conv_forward.2} parent=5 // pred_region
      %s172 = ssub.s32 %s12, 1
      // Predicated region
      $region13: #{basic_conv_forward.2} parent=11 // pred_check
        %p173 = pneg %p59
      $region14: #{basic_conv_forward.2} parent=11 // pred_check_branch
        %175 = sbr.rel (%p173) target = $region16
      $region15: #{basic_conv_forward.2} parent=11 // pred_region
        _
      $region16: #{basic_conv_forward.2} parent=11 // pred_fallthru
        _
      // Predicated region
      $region17: #{basic_conv_forward.2} parent=11 // pred_check
        %p176 = pneg %p80
      $region18: #{basic_conv_forward.2} parent=11 // pred_check_branch
        %178 = sbr.rel (%p176) target = $region20
      $region19: #{basic_conv_forward.2} parent=11 // pred_region
        _
      $region20: #{basic_conv_forward.2} parent=11 // pred_fallthru
        _
    $region12: #{basic_conv_forward.2} parent=5 // pred_fallthru
      _
    %p179 = scmp.lt.s32.totalorder %s12, 2
    // Predicated region
    $region21: #{basic_conv_forward.2} parent=5 // pred_check
      %p180 = pneg %p179
    $region22: #{basic_conv_forward.2} parent=5 // pred_check_branch
      %182 = sbr.rel (%p180) target = $region24
    $region23: #{basic_conv_forward.2} parent=5 // pred_region
      // Predicated region
      $region25: #{basic_conv_forward.2} parent=23 // pred_check
        %p183 = pneg %p32
      $region26: #{basic_conv_forward.2} parent=23 // pred_check_branch
        %185 = sbr.rel (%p183) target = $region28
      $region27: #{basic_conv_forward.2} parent=23 // pred_region
        %p186 = scmp.lt.s32.totalorder %s12, 1
        %s187 = scalar_select %p186, %s12, 1
        %s188 = smul.addr %s187, 4
        %s189 = smul.addr %s188, 2
        %s190 = scalar_lea.vmem %s0, %s189
      $region28: #{basic_conv_forward.2} parent=23 // pred_fallthru
        _
    $region24: #{basic_conv_forward.2} parent=5 // pred_fallthru
      _
    %p191 = scmp.le.s32.totalorder 1, %s12
    %p192 = scmp.lt.s32.totalorder %s12, 3
    %p193 = pnand %p191, %p192
    %p194 = pneg %p193
    // Predicated region
    $region29: #{basic_conv_forward.2} parent=5 // pred_check
      _
    $region30: #{basic_conv_forward.2} parent=5 // pred_check_branch
      %196 = sbr.rel (%p193) target = $region32
    $region31: #{basic_conv_forward.2} parent=5 // pred_region
      %s197 = ssub.s32 %s12, 1
      %p198 = scmp.lt.s32.totalorder %s17, 1
      %s199 = scalar_select %p198, %s17, 1
      %s200 = smul.addr %s199, 4
      %s201 = smul.addr %s200, 2
      %s202 = scalar_lea.vmem %s0, %s201
      %p203 = pneg %p38
      %p204 = pneg %p35
      %p205 = pneg %p59
      %p206 = pneg %p56
      %p207 = pneg %p80
      %p208 = pneg %p77
      %p209 = pneg %p106
      %p210 = pneg %p103
      %p211 = scmp.lt.s32.totalorder %s17, 1
      %s212 = scalar_select %p211, %s17, 1
      %s213 = smul.addr %s212, 3
      %s214 = smul.addr %s213, 4
      %s215 = scalar_lea.vmem %s3, %s214
      %p216 = pneg %p132
      %p217 = pneg %p129
      %p218 = scmp.lt.s32.totalorder %s17, 1
      %s219 = scalar_select %p218, %s17, 1
      %s220 = smul.addr %s219, 8
      %s221 = scalar_lea.vmem %s4, %s220
      %p222 = pneg %p158
      %p223 = pneg %p155
      %p224 = scmp.lt.s32.totalorder %s17, 1
      %s225 = scalar_select %p224, %s17, 1
      %s226 = smul.addr %s225, 8
      %s227 = scalar_lea.vmem %s5, %s226
      %p228 = scmp.lt.s32.totalorder %s17, 1
      %s229 = scalar_select %p228, %s17, 1
      %s230 = smul.addr %s229, 4
      %s231 = smul.addr %s230, 2
      %s232 = scalar_lea.vmem %s0, %s231
      %p233 = scmp.lt.s32.totalorder %s17, 1
      %s234 = scalar_select %p233, %s17, 1
      %s235 = smul.addr %s234, 3
      %s236 = smul.addr %s235, 4
      %s237 = scalar_lea.vmem %s3, %s236
      %p238 = scmp.lt.s32.totalorder %s17, 1
      %s239 = scalar_select %p238, %s17, 1
      %s240 = smul.addr %s239, 8
      %s241 = scalar_lea.vmem %s4, %s240
      %p242 = scmp.lt.s32.totalorder %s17, 1
      %s243 = scalar_select %p242, %s17, 1
      %s244 = smul.addr %s243, 8
      %s245 = scalar_lea.vmem %s5, %s244
      %v247 = vld [vmem:[%s232] sm:$0xff]
      %249 = vst [vmem:[#allocation1] ss:$2 sm:$0xff] %v247
      %v250 = vld.sshfl [vmem:[#allocation1] sm:$0xff pattern:$0x75643120]
      %v251 = vld.sshfl [vmem:[#allocation1 + $0x8] sm:$0xff pattern:$0x75643120]
      %254 = vst [vmem:[#allocation2] sm:$0x33] %v250
      %255 = vst [vmem:[#allocation2 + $0x8] sm:$0x3] %v251
      %s256 = scalar_lea.vmem [#allocation1], 1
      %257 = vst [vmem:[%s256] ss:$2 sm:$0xff] %v247
      %v258 = vld.sshfl [vmem:[#allocation1] sm:$0xff pattern:$0x75643120]
      %v260 = vld.sshfl [vmem:[#allocation1 + $0x8] sm:$0xff pattern:$0x75643120]
      %262 = vrot.lane.b32.xlu0 %v258, 127
      %v263 = vpop.permute.xlu0 %262
      %264 = vrot.lane.b32.xlu0 %v260, 127
      %v265 = vpop.permute.xlu0 %264
      %v266 = vrot.slane %v263, 4
      %v267 = vrot.slane %v265, 4
      %vm268 = vcmask 1043456
      %v269 = vsel %vm268, %v266, %v267
      %vm270 = vcmask 1039360
      %v271 = vsel %vm270, %v263, %v269
      %v272 = vsel %vm270, %v265, %v267
      %275 = vst [vmem:[#allocation2] sm:$0xcc] %v271
      %276 = vst [vmem:[#allocation2 + $0x8] sm:$0xc] %v272
      %277 = vst [vmem:[#allocation1] ss:$2 sm:$0xff] %v247
      %v278 = vld.sshfl [vmem:[#allocation1] sm:$0xff pattern:$0x75643120]
      %v280 = vld.sshfl [vmem:[#allocation1 + $0x8] sm:$0xff pattern:$0x75643120]
      %282 = vrot.lane.b32.xlu0 %v278, 126
      %v283 = vpop.permute.xlu0 %282
      %284 = vrot.lane.b32.xlu0 %v280, 126
      %v285 = vpop.permute.xlu0 %284
      %v286 = vrot.slane %v283, 4
      %v287 = vrot.slane %v285, 4
      %v288 = vsel %vm268, %v286, %v287
      %vm289 = vcmask 1031168
      %v290 = vsel %vm289, %v283, %v288
      %v291 = vsel %vm289, %v285, %v287
      %294 = vst [vmem:[#allocation2 + $0xc] sm:$0x33] %v290
      %295 = vst [vmem:[#allocation2 + $0x14] sm:$0x3] %v291
      %s296 = scalar_lea.vmem [#allocation1], 1
      %297 = vst [vmem:[%s296] ss:$2 sm:$0xff] %v247
      %v298 = vld.sshfl [vmem:[#allocation1] sm:$0xff pattern:$0x75643120]
      %v300 = vld.sshfl [vmem:[#allocation1 + $0x8] sm:$0xff pattern:$0x75643120]
      %302 = vrot.lane.b32.xlu0 %v298, 110
      %v303 = vpop.permute.xlu0 %302
      %304 = vrot.lane.b32.xlu0 %v300, 110
      %v305 = vpop.permute.xlu0 %304
      %v306 = vrot.slane %v303, 4
      %v307 = vrot.slane %v305, 4
      %v308 = vsel %vm268, %v306, %v307
      %vm309 = vcmask 900096
      %v310 = vsel %vm309, %v303, %v308
      %v311 = vsel %vm309, %v305, %v307
      %314 = vst [vmem:[#allocation2 + $0xc] sm:$0xcc] %v310
      %315 = vst [vmem:[#allocation2 + $0x14] sm:$0xc] %v311
      %316 = vst [vmem:[#allocation1] ss:$2 sm:$0xff] %v247
      %v317 = vld.sshfl [vmem:[#allocation1] sm:$0xff pattern:$0x75643120]
      %v319 = vld.sshfl [vmem:[#allocation1 + $0x8] sm:$0xff pattern:$0x75643120]
      %321 = vrot.lane.b32.xlu0 %v317, 109
      %v322 = vpop.permute.xlu0 %321
      %323 = vrot.lane.b32.xlu0 %v319, 109
      %v324 = vpop.permute.xlu0 %323
      %v325 = vrot.slane %v322, 4
      %v326 = vrot.slane %v324, 4
      %v327 = vsel %vm268, %v325, %v326
      %vm328 = vcmask 891904
      %v329 = vsel %vm328, %v322, %v327
      %v330 = vsel %vm328, %v324, %v326
      %333 = vst [vmem:[#allocation2 + $0x18] sm:$0x33] %v329
      %334 = vst [vmem:[#allocation2 + $0x20] sm:$0x3] %v330
      %s335 = scalar_lea.vmem [#allocation1], 1
      %336 = vst [vmem:[%s335] ss:$2 sm:$0xff] %v247
      %v337 = vld.sshfl [vmem:[#allocation1] sm:$0xff pattern:$0x75643120]
      %v339 = vld.sshfl [vmem:[#allocation1 + $0x8] sm:$0xff pattern:$0x75643120]
      %341 = vrot.lane.b32.xlu0 %v337, 108
      %v342 = vpop.permute.xlu0 %341
      %343 = vrot.lane.b32.xlu0 %v339, 108
      %v344 = vpop.permute.xlu0 %343
      %v345 = vrot.slane %v342, 4
      %v346 = vrot.slane %v344, 4
      %v347 = vsel %vm268, %v345, %v346
      %vm348 = vcmask 883712
      %v349 = vsel %vm348, %v342, %v347
      %v350 = vsel %vm348, %v344, %v346
      %353 = vst [vmem:[#allocation2 + $0x18] sm:$0xcc] %v349
      %354 = vst [vmem:[#allocation2 + $0x20] sm:$0xc] %v350
      %355 = vst [vmem:[#allocation1] ss:$2 sm:$0xff] %v247
      %v356 = vld.sshfl [vmem:[#allocation1] sm:$0xff pattern:$0x75643120]
      %v358 = vld.sshfl [vmem:[#allocation1 + $0x8] sm:$0xff pattern:$0x75643120]
      %360 = vrot.lane.b32.xlu0 %v356, 92
      %v361 = vpop.permute.xlu0 %360
      %362 = vrot.lane.b32.xlu0 %v358, 92
      %v363 = vpop.permute.xlu0 %362
      %v364 = vrot.slane %v361, 4
      %v365 = vrot.slane %v363, 4
      %v366 = vsel %vm268, %v364, %v365
      %vm367 = vcmask 752640
      %v368 = vsel %vm367, %v361, %v366
      %v369 = vsel %vm367, %v363, %v365
      %372 = vst [vmem:[#allocation2 + $0x24] sm:$0x33] %v368
      %373 = vst [vmem:[#allocation2 + $0x2c] sm:$0x3] %v369
      %s374 = scalar_lea.vmem [#allocation1], 1
      %375 = vst [vmem:[%s374] ss:$2 sm:$0xff] %v247
      %v376 = vld.sshfl [vmem:[#allocation1] sm:$0xff pattern:$0x75643120]
      %v378 = vld.sshfl [vmem:[#allocation1 + $0x8] sm:$0xff pattern:$0x75643120]
      %380 = vrot.lane.b32.xlu0 %v376, 91
      %v381 = vpop.permute.xlu0 %380
      %382 = vrot.lane.b32.xlu0 %v378, 91
      %v383 = vpop.permute.xlu0 %382
      %v384 = vrot.slane %v381, 4
      %v385 = vrot.slane %v383, 4
      %v386 = vsel %vm268, %v384, %v385
      %vm387 = vcmask 744448
      %v388 = vsel %vm387, %v381, %v386
      %v389 = vsel %vm387, %v383, %v385
      %392 = vst [vmem:[#allocation2 + $0x24] sm:$0xcc] %v388
      %393 = vst [vmem:[#allocation2 + $0x2c] sm:$0xc] %v389
      %394 = vst [vmem:[#allocation1] ss:$2 sm:$0xff] %v247
      %v395 = vld.sshfl [vmem:[#allocation1] sm:$0xff pattern:$0x75643120]
      %v397 = vld.sshfl [vmem:[#allocation1 + $0x8] sm:$0xff pattern:$0x75643120]
      %399 = vrot.lane.b32.xlu0 %v395, 90
      %v400 = vpop.permute.xlu0 %399
      %401 = vrot.lane.b32.xlu0 %v397, 90
      %v402 = vpop.permute.xlu0 %401
      %v403 = vrot.slane %v400, 4
      %v404 = vrot.slane %v402, 4
      %v405 = vsel %vm268, %v403, %v404
      %vm406 = vcmask 736256
      %v407 = vsel %vm406, %v400, %v405
      %v408 = vsel %vm406, %v402, %v404
      %411 = vst [vmem:[#allocation2 + $0x30] sm:$0x33] %v407
      %412 = vst [vmem:[#allocation2 + $0x38] sm:$0x3] %v408
      %v413 = vld [vmem:[%s1] sm:$0xf]
      %v414 = vld [vmem:[#allocation2] sm:$0xff]
      %v415 = vld [vmem:[#allocation2 + $0x8] sm:$0xf]
      %v416 = vld [vmem:[#allocation2 + $0xc] sm:$0xff]
      %v417 = vld [vmem:[#allocation2 + $0x14] sm:$0xf]
      %v418 = vld [vmem:[#allocation2 + $0x18] sm:$0xff]
      %v419 = vld [vmem:[#allocation2 + $0x20] sm:$0xf]
      %v420 = vld [vmem:[#allocation2 + $0x24] sm:$0xff]
      %v421 = vld [vmem:[#allocation2 + $0x2c] sm:$0xf]
      %v422 = vld [vmem:[#allocation2 + $0x30] sm:$0x33]
      %v423 = vld [vmem:[#allocation2 + $0x38] sm:$0x3]
      %v434 = vunpack.c.l.b16 %v414
      %v435 = vunpack.c.h.b16 %v414
      %v436 = vunpack.c.l.b16 %v415
      %v437 = vunpack.c.l.b16 %v416
      %v438 = vunpack.c.h.b16 %v416
      %v439 = vunpack.c.l.b16 %v417
      %v440 = vunpack.c.l.b16 %v418
      %v441 = vunpack.c.h.b16 %v418
      %v442 = vunpack.c.l.b16 %v419
      %v443 = vunpack.c.l.b16 %v420
      %v444 = vunpack.c.h.b16 %v420
      %v445 = vunpack.c.l.b16 %v421
      %v446 = vunpack.c.l.b16 %v422
      %v447 = vunpack.c.h.b16 %v422
      %v448 = vunpack.c.l.b16 %v423
      %v449 = vpack.c.b16 %v437, %v434
      %v450 = vpack.c.b16 %v438, %v435
      %v451 = vpack.c.b16 %v439, %v436
      %v452 = vpack.c.b16 %v443, %v440
      %v453 = vpack.c.b16 %v444, %v441
      %v454 = vpack.c.b16 %v445, %v442
      %v455 = vpack.c.b16 %v446, %v446
      %v456 = vpack.c.b16 %v447, %v447
      %v457 = vpack.c.b16 %v448, %v448
      %vm464 = vcmask 293888
      %v466 = vsel %vm464, %v413, 0
      %vm468 = vcmask 1041408
      %v470 = vsel %vm468, %v455, 0
      %v473 = vsel %vm468, %v456, 0
      %v476 = vsel %vm468, %v457, 0
      %478 = vmatpush.bf16.msra.mxu0 0
      %479 = vmatpush.bf16.msra.mxu0 0
      %480 = vmatpush.bf16.msra.mxu0 0
      %481 = vmatpush.bf16.msra.mxu0 0
      %482 = vmatpush.bf16.msra.mxu0 0
      %483 = vmatpush.bf16.msra.mxu0 %v470
      %484 = vmatpush.bf16.msra.mxu0 %v452
      %485 = vmatpush.bf16.msra.mxu0 %v449
      %486 = vmatmul.bf16.gmra.mxu0 %v466
      %v487 = vpop.f32.mrf.mxu0
      %v488 = vadd.f32 0.0, %v487
      %v489 = vpop.f32.mrf.mxu0
      %490 = vdwg.mxu0
      %491 = vmatpush.bf16.msra.mxu0 0
      %492 = vmatpush.bf16.msra.mxu0 0
      %493 = vmatpush.bf16.msra.mxu0 0
      %494 = vmatpush.bf16.msra.mxu0 0
      %495 = vmatpush.bf16.msra.mxu0 0
      %496 = vmatpush.bf16.msra.mxu0 %v473
      %497 = vmatpush.bf16.msra.mxu0 %v453
      %498 = vmatpush.bf16.msra.mxu0 %v450
      %499 = vmatmul.bf16.gmra.mxu0 %v466
      %v500 = vpop.f32.mrf.mxu0
      %v501 = vadd.f32 0.0, %v500
      %v502 = vpop.f32.mrf.mxu0
      %503 = vdwg.mxu0
      %504 = vmatpush.bf16.msra.mxu0 0
      %505 = vmatpush.bf16.msra.mxu0 0
      %506 = vmatpush.bf16.msra.mxu0 0
      %507 = vmatpush.bf16.msra.mxu0 0
      %508 = vmatpush.bf16.msra.mxu0 0
      %509 = vmatpush.bf16.msra.mxu0 %v476
      %510 = vmatpush.bf16.msra.mxu0 %v454
      %511 = vmatpush.bf16.msra.mxu0 %v451
      %512 = vmatmul.bf16.gmra.mxu0 %v466
      %v513 = vpop.f32.mrf.mxu0
      %v514 = vadd.f32 0.0, %v513
      %v515 = vpop.f32.mrf.mxu0
      %516 = vdwg.mxu0
      %v517 = vpack.c.bf16 %v501, %v488
      %v518 = vpack.c.bf16 %v514, %v514
      %519 = vst [vmem:[%s237] sm:$0xff] %v517
      %520 = vst [vmem:[%s237 + $0x8] sm:$0xf] %v518
      %v521 = vld [vmem:[%s2] sm:$0x7]
      %v523 = vperm.slane %v521, 0
      %v524 = vperm.slane %v521, 1
      %v525 = vperm.slane %v521, 2
      %v529 = vmul.f32 %v488, %v523
      %v530 = vmul.f32 %v501, %v524
      %v531 = vmul.f32 %v514, %v525
      %v532 = vadd.f32 %v529, %v530
      %v533 = vadd.f32 %v532, %v531
      %534 = vadd.xlane.f32.xlu0 %v533
      %v535 = vpop.xlane.xlu0 %534
      %vm536 = vcmask 7168
      %537 = vst.msk [vmem:[%s241] sm:$0xff] %vm536, %v535
      %v538 = vmul.f32 %v529, %v488
      %v539 = vmul.f32 %v530, %v501
      %v540 = vmul.f32 %v531, %v514
      %v541 = vadd.f32 %v538, %v539
      %v542 = vadd.f32 %v541, %v540
      %543 = vadd.xlane.f32.xlu0 %v542
      %v544 = vpop.xlane.xlu0 %543
      %545 = vst.msk [vmem:[%s245] sm:$0xff] %vm536, %v544
      %p546 = scmp.lt.s32.totalorder %s17, 1
      %s547 = scalar_select %p546, %s17, 1
      %s548 = smul.addr %s547, 3
      %s549 = smul.addr %s548, 4
      %s550 = scalar_lea.vmem %s3, %s549
      %p551 = scmp.lt.s32.totalorder %s17, 1
      %s552 = scalar_select %p551, %s17, 1
      %s553 = smul.addr %s552, 8
      %s554 = scalar_lea.vmem %s4, %s553
      %p555 = scmp.lt.s32.totalorder %s17, 1
      %s556 = scalar_select %p555, %s17, 1
      %s557 = smul.addr %s556, 8
      %s558 = scalar_lea.vmem %s5, %s557
      // Predicated region
      $region33: #{basic_conv_forward.2} parent=31 // pred_check
        %p559 = pneg %p103
      $region34: #{basic_conv_forward.2} parent=31 // pred_check_branch
        %561 = sbr.rel (%p559) target = $region36
      $region35: #{basic_conv_forward.2} parent=31 // pred_region
        _
      $region36: #{basic_conv_forward.2} parent=31 // pred_fallthru
        _
      // Predicated region
      $region37: #{basic_conv_forward.2} parent=31 // pred_check
        %p562 = pneg %p129
      $region38: #{basic_conv_forward.2} parent=31 // pred_check_branch
        %564 = sbr.rel (%p562) target = $region40
      $region39: #{basic_conv_forward.2} parent=31 // pred_region
        _
      $region40: #{basic_conv_forward.2} parent=31 // pred_fallthru
        _
      // Predicated region
      $region41: #{basic_conv_forward.2} parent=31 // pred_check
        %p565 = pneg %p155
      $region42: #{basic_conv_forward.2} parent=31 // pred_check_branch
        %567 = sbr.rel (%p565) target = $region44
      $region43: #{basic_conv_forward.2} parent=31 // pred_region
        _
      $region44: #{basic_conv_forward.2} parent=31 // pred_fallthru
        _
    $region32: #{basic_conv_forward.2} parent=5 // pred_fallthru
      _
    %p568 = scmp.le.s32.totalorder 2, %s12
    // Predicated region
    $region45: #{basic_conv_forward.2} parent=5 // pred_check
      %p569 = pneg %p568
    $region46: #{basic_conv_forward.2} parent=5 // pred_check_branch
      %571 = sbr.rel (%p569) target = $region48
    $region47: #{basic_conv_forward.2} parent=5 // pred_region
      %s572 = ssub.s32 %s12, 2
      // Predicated region
      $region49: #{basic_conv_forward.2} parent=47 // pred_check
        %p573 = pneg %p109
      $region50: #{basic_conv_forward.2} parent=47 // pred_check_branch
        %575 = sbr.rel (%p573) target = $region52
      $region51: #{basic_conv_forward.2} parent=47 // pred_region
        %p576 = scmp.lt.s32.totalorder %s18, 1
        %s577 = scalar_select %p576, %s18, 1
        %s578 = smul.addr %s577, 3
        %s579 = smul.addr %s578, 4
        %s580 = scalar_lea.vmem %s3, %s579
      $region52: #{basic_conv_forward.2} parent=47 // pred_fallthru
        _
      // Predicated region
      $region53: #{basic_conv_forward.2} parent=47 // pred_check
        %p581 = pneg %p135
      $region54: #{basic_conv_forward.2} parent=47 // pred_check_branch
        %583 = sbr.rel (%p581) target = $region56
      $region55: #{basic_conv_forward.2} parent=47 // pred_region
        %p584 = scmp.lt.s32.totalorder %s18, 1
        %s585 = scalar_select %p584, %s18, 1
        %s586 = smul.addr %s585, 8
        %s587 = scalar_lea.vmem %s4, %s586
      $region56: #{basic_conv_forward.2} parent=47 // pred_fallthru
        _
      // Predicated region
      $region57: #{basic_conv_forward.2} parent=47 // pred_check
        %p588 = pneg %p161
      $region58: #{basic_conv_forward.2} parent=47 // pred_check_branch
        %590 = sbr.rel (%p588) target = $region60
      $region59: #{basic_conv_forward.2} parent=47 // pred_region
        %p591 = scmp.lt.s32.totalorder %s18, 1
        %s592 = scalar_select %p591, %s18, 1
        %s593 = smul.addr %s592, 8
        %s594 = scalar_lea.vmem %s5, %s593
      $region60: #{basic_conv_forward.2} parent=47 // pred_fallthru
        _
    $region48: #{basic_conv_forward.2} parent=5 // pred_fallthru
      _
  $region6: #{basic_conv_forward.2} parent=0 // loop_footer
    %s16 = sadd.s32 1, %s12
  $region7: #{basic_conv_forward.2} parent=0 // loop_footer_branch
    %11 = sbr.rel target = $region3
  $region8: #{basic_conv_forward.2} parent=0 // loop_exit
    _

</llo_original>
